<compile_context>
chip_gen: v5e
topology: v5e:2x2
jax: 0.10.0
libtpu: 0.0.40
codegen_flags: <defaults>
</compile_context>

<pallas_src>
import functools

import jax
import jax.numpy as jnp
from jax import lax
from jax.experimental import pallas as pl
from jax.experimental.pallas import tpu as pltpu


def _gram_kernel(mat_ref, out_ref, *, nks, tk, hw, mask_tail):
    # mat_ref : (1, C, tk) VMEM   -- one K-tile of the flattened activation
    # out_ref : (1, 1, C, C) f32  -- resident raw-gram accumulator for (b, s)
    k = pl.program_id(2)

    @pl.when(k == 0)
    def _():
        out_ref[...] = jnp.zeros_like(out_ref)

    mat = mat_ref[0]  # (C, tk)
    if mask_tail:
        # Zero lanes past the true HW extent: the tail K-tile and any clamped
        # fully-out-of-range step of the S split contribute nothing.
        k_glob = pl.program_id(1) * nks + k
        valid = lax.broadcasted_iota(jnp.int32, mat.shape, 1) < (hw - k_glob * tk)
        mat = jnp.where(valid, mat, jnp.zeros_like(mat))

    # A @ A^T with the transpose folded into the contraction (no second tile
    # copy, no XLU transpose); f32 accumulation on the MXU.
    out_ref[0, 0] += lax.dot_general(
        mat,
        mat,
        dimension_numbers=(((1,), (1,)), ((), ())),
        preferred_element_type=jnp.float32,
    )


def style_loss_pallas(x_nchw, target_gram, eps=1e-8,
                      use_bf16_activations=False, tk_cap=32768):
    """x_nchw: (B, C, H, W).  target_gram: (B, C, C).  Returns scalar loss."""
    B, C, H, W = x_nchw.shape
    HW = H * W
    act_dtype = jnp.bfloat16 if use_bf16_activations else jnp.float32
    itemsize = 2 if use_bf16_activations else 4
    mat = x_nchw.reshape(B, C, HW).astype(act_dtype)

    # ---- generation-aware VMEM budget --------------------------------------
    try:
        vmem_cap = int(pltpu.get_tpu_info().vmem_capacity_bytes)
    except Exception:
        vmem_cap = 64 << 20  # safe lower bound (v7x); v5e/v6e have 128 MiB
    out_bytes = 2 * C * C * 4  # double-buffered (1,1,C,C) f32 output block
    act_budget = min(max(vmem_cap - out_bytes - (16 << 20), 4 << 20), 64 << 20)

    # ---- K (HW) tile: as large as the budget allows, lane-aligned, prefer an
    # exact divisor of HW so no tail masking is needed ------------------------
    tk = min(HW, tk_cap, act_budget // (2 * C * itemsize))
    if tk >= HW:
        tk = HW  # single exact tile (full-dim block, always legal)
    else:
        tk = max(128, (tk // 128) * 128)
        for cand in range(tk, tk // 2, -128):
            if HW % cand == 0:
                tk = cand
                break
    nk = -(-HW // tk)

    # ---- split the K tiles into S parallel super-chunks when B == 1 so both
    # v7x TensorCores have work (harmless on v5e/v6e) --------------------------
    s_split = 2 if (B == 1 and nk >= 2) else 1
    nks = -(-nk // s_split)
    mask_tail = (s_split * nks * tk != HW)

    if s_split * nks == nk:
        idx_map = lambda b, s, k: (b, 0, s * nks + k)
    else:
        last_blk = nk - 1  # clamp the duplicated step; it is fully zero-masked
        idx_map = lambda b, s, k: (b, 0, jnp.minimum(s * nks + k, last_blk))

    vmem_need = 2 * C * tk * itemsize + out_bytes
    vmem_limit = int(max(min(vmem_cap, vmem_need + (8 << 20)), 16 << 20))

    kernel = functools.partial(_gram_kernel, nks=nks, tk=tk, hw=HW,
                               mask_tail=mask_tail)

    partial_grams = pl.pallas_call(
        kernel,
        out_shape=jax.ShapeDtypeStruct((B, s_split, C, C), jnp.float32),
        grid_spec=pltpu.PrefetchScalarGridSpec(
            num_scalar_prefetch=0,
            grid=(B, s_split, nks),
            in_specs=[pl.BlockSpec((1, C, tk), idx_map)],
            out_specs=pl.BlockSpec((1, 1, C, C), lambda b, s, k: (b, s, 0, 0)),
        ),
        compiler_params=pltpu.CompilerParams(
            dimension_semantics=("parallel", "parallel", "arbitrary"),
            vmem_limit_bytes=vmem_limit,
        ),
    )(mat)

    # ---- tiny epilogue in plain JAX: scale, diff, scaled-MSE -----------------
    gram = jnp.sum(partial_grams, axis=1) * jnp.float32(1.0 / HW)  # (B, C, C)
    diff = gram - target_gram.astype(jnp.float32)
    return jnp.sum(diff * diff) / (jnp.sum(jnp.abs(diff)) + jnp.float32(eps))


def get_target_ref(x_nchw):
    """Plain-JAX equivalent of StyleLoss.get_target (builds the target buffer)."""
    B, C, H, W = x_nchw.shape
    mat = x_nchw.reshape(B, C, H * W).astype(jnp.float32)
    return jnp.einsum("bci,bdi->bcd", mat, mat,
                      precision=jax.lax.Precision.HIGHEST) / (H * W)


def style_loss_ref(x_nchw, target_gram, eps=1e-8):
    gram = get_target_ref(x_nchw)
    diff = gram - target_gram
    return jnp.sum(diff ** 2) / (jnp.sum(jnp.abs(diff)) + eps)


if __name__ == "__main__":
    key = jax.random.PRNGKey(0)
    k_style, k_input, k_style2, k_input2 = jax.random.split(key, 4)
    eps = 1e-8

    # --- main check: shapes implied by the module (B=2, C=4, 16x16) ----------
    B, C, H, W = 2, 4, 16, 16
    style = jax.random.normal(k_style, (B, C, H, W), dtype=jnp.float32)
    target_gram = get_target_ref(style)          # StyleLoss.__init__ buffer
    x = jax.random.normal(k_input, (B, C, H, W), dtype=jnp.float32)

    loss = jax.block_until_ready(style_loss_pallas(x, target_gram, eps=eps))
    loss_ref = jax.block_until_ready(style_loss_ref(x, target_gram, eps=eps))
    assert jnp.allclose(loss, loss_ref, rtol=1e-4, atol=1e-5), (loss, loss_ref)

    # --- exercise K-tiling, tail masking and the B==1 dual-TC split ----------
    B2, C2, H2, W2 = 1, 4, 18, 18
    style2 = jax.random.normal(k_style2, (B2, C2, H2, W2), dtype=jnp.float32)
    tgt2 = get_target_ref(style2)
    x2 = jax.random.normal(k_input2, (B2, C2, H2, W2), dtype=jnp.float32)
    loss2 = jax.block_until_ready(style_loss_pallas(x2, tgt2, eps=eps, tk_cap=128))
    loss2_ref = jax.block_until_ready(style_loss_ref(x2, tgt2, eps=eps))
    assert jnp.allclose(loss2, loss2_ref, rtol=1e-4, atol=1e-5), (loss2, loss2_ref)

    # --- opt-in bf16 activation path (looser tolerance) ----------------------
    loss_bf16 = jax.block_until_ready(
        style_loss_pallas(x, target_gram, eps=eps, use_bf16_activations=True))
    assert jnp.allclose(loss_bf16, loss_ref, rtol=1e-1, atol=1e-2), (loss_bf16, loss_ref)

    print("KERNEL_OK")
</pallas_src>

<mosaic_0001>
module attributes {stable_mosaic.version = 11 : i64} {
  func.func @_gram_kernel(%arg0: i32, %arg1: i32, %arg2: i32, %arg3: memref<1x4x256xf32, #tpu.memory_space<vmem>>, %arg4: memref<1x1x4x4xf32, #tpu.memory_space<vmem>>) attributes {dimension_semantics = [#tpu.dimension_semantics<parallel>, #tpu.dimension_semantics<parallel>, #tpu.dimension_semantics<arbitrary>], iteration_bounds = array<i64: 2, 1, 1>, scalar_prefetch = 0 : i64, scratch_operands = 0 : i64, tpu.core_type = #tpu.core_type<tc>, window_params = [{transform_indices = @transform_0, window_bounds = array<i64: 1, 4, 256>}, {transform_indices = @transform_1, window_bounds = array<i64: 1, 1, 4, 4>}]} {
    %c0_i32 = arith.constant 0 : i32
    %0 = arith.cmpi eq, %arg2, %c0_i32 : i32
    %1 = arith.extui %0 : i1 to i32
    %c0_i32_0 = arith.constant 0 : i32
    %2 = arith.cmpi ne, %1, %c0_i32_0 : i32
    scf.if %2 {
      %cst_11 = arith.constant 0.000000e+00 : f32
      %12 = vector.broadcast %cst_11 : f32 to vector<1x1x4x4xf32>
      %c0_12 = arith.constant 0 : index
      %c0_13 = arith.constant 0 : index
      %c0_14 = arith.constant 0 : index
      %c0_15 = arith.constant 0 : index
      %13 = vector.load %arg4[%c0_12, %c0_13, %c0_14, %c0_15] : memref<1x1x4x4xf32, #tpu.memory_space<vmem>>, vector<1x1x4x4xf32>
      tpu.vector_store %arg4[%c0_12, %c0_13, %c0_14, %c0_15], %12 {strides = array<i32>} : memref<1x1x4x4xf32, #tpu.memory_space<vmem>>, vector<1x1x4x4xf32>,
    } else {
    }
    %c0 = arith.constant 0 : index
    %c0_1 = arith.constant 0 : index
    %c0_2 = arith.constant 0 : index
    %3 = vector.load %arg3[%c0, %c0_1, %c0_2] : memref<1x4x256xf32, #tpu.memory_space<vmem>>, vector<1x4x256xf32>
    %4 = vector.shape_cast %3 : vector<1x4x256xf32> to vector<4x256xf32>
    %c0_3 = arith.constant 0 : index
    %c0_4 = arith.constant 0 : index
    %c0_5 = arith.constant 0 : index
    %c0_6 = arith.constant 0 : index
    %5 = vector.load %arg4[%c0_3, %c0_4, %c0_5, %c0_6] : memref<1x1x4x4xf32, #tpu.memory_space<vmem>>, vector<1x1x4x4xf32>
    %6 = vector.shape_cast %5 : vector<1x1x4x4xf32> to vector<4x4xf32>
    %cst = arith.constant dense<0.000000e+00> : vector<4x4xf32>
    %7 = tpu.matmul %4, %4, %cst {dimension_numbers = #tpu.dot_dimension_numbers<[1], [1], [0], [0], [0, 0, 1, 0], [], []>} : vector<4x256xf32>, vector<4x256xf32>, vector<4x4xf32> -> vector<4x4xf32>
    %8 = arith.addf %6, %7 : vector<4x4xf32>
    %c0_7 = arith.constant 0 : index
    %c0_8 = arith.constant 0 : index
    %c0_9 = arith.constant 0 : index
    %c0_10 = arith.constant 0 : index
    %9 = vector.load %arg4[%c0_7, %c0_8, %c0_9, %c0_10] : memref<1x1x4x4xf32, #tpu.memory_space<vmem>>, vector<1x1x4x4xf32>
    %10 = vector.shape_cast %9 : vector<1x1x4x4xf32> to vector<4x4xf32>
    %11 = vector.shape_cast %8 : vector<4x4xf32> to vector<1x1x4x4xf32>
    tpu.vector_store %arg4[%c0_7, %c0_8, %c0_9, %c0_10], %11 {strides = array<i32>} : memref<1x1x4x4xf32, #tpu.memory_space<vmem>>, vector<1x1x4x4xf32>,
    return
  }
  func.func @transform_0(%arg0: i32, %arg1: i32, %arg2: i32) -> (i32, i32, i32) {
    %c1_i32 = arith.constant 1 : i32
    %0 = arith.muli %arg1, %c1_i32 : i32
    %1 = arith.addi %0, %arg2 : i32
    %c0_i32 = arith.constant 0 : i32
    %c0_i32_0 = arith.constant 0 : i32
    return %arg0, %c0_i32, %1 : i32, i32, i32
  }
  func.func @transform_1(%arg0: i32, %arg1: i32, %arg2: i32) -> (i32, i32, i32, i32) {
    %c0_i32 = arith.constant 0 : i32
    %c0_i32_0 = arith.constant 0 : i32
    %c0_i32_1 = arith.constant 0 : i32
    return %arg0, %arg1, %c0_i32, %c0_i32_0 : i32, i32, i32, i32
  }
}

</mosaic_0001>

<llo_original>
// kernel: tpu_custom_call.1
$region0: #{tpu_custom_call.1}
  #allocation0 [shape = 'u32[]', space=smem, size = 0x4, offset = 0x4, fixed_abs, tag = 'smem constant byte address 0x4 - core index']
  #allocation1 [shape = 'u32[72,128]{1,0:T(1,128)}', space=vmem, size = 0x9000, scoped, tag = 'internal scratch']
  %s0 = inlined_call_operand.hbm [shape: f32[2,4,256], index: 0, kind: input, shape index: {}]
  %s1 = inlined_call_operand.hbm [shape: f32[2,1,4,4], index: 1, kind: output, shape index: {}]
  %s2 = sld [smem:[#allocation0]]
  $region45: #{tpu_custom_call.1} parent=0
    _
  %s4 = ssub.s32 1, %s2
  %s5 = scalar_select 0, %s4, %s2
  $region1: #{tpu_custom_call.1} parent=0
    #allocation2 [shape = 'u8[8192]{0}', space=vmem, size = 0x2000, scoped, tag = 'input window, operand 0']
    #allocation3 [shape = 's32[2]{0}', space=sflag, size = 0x8, scoped, tag = 'scoped memory for tpu_custom_call.1']
    #allocation4 [shape = 's32[2]{0}', space=sflag, size = 0x8, scoped, tag = 'scoped memory for tpu_custom_call.1']
    #allocation5 [shape = 'u8[4096]{0}', space=vmem, size = 0x1000, scoped, tag = 'output window, operand 0']
    %6 = vsyncpa [#allocation3], 0
    %s7 = scalar_lea.sflag [#allocation3], 1
    %8 = vsyncpa %s7, 0
    %9 = vsyncpa [#allocation4], 0
    %s10 = scalar_lea.sflag [#allocation4], 1
    %11 = vsyncpa %s10, 0
    loop: start=0, step=1, limit=4
    $region2: #{tpu_custom_call.1} parent=1 // loop_pre_header
      _
    $region3: #{tpu_custom_call.1} parent=1 // loop_header
      %s13 = sphi 0, %s17
      %p14 = scmp.ge.s32.totalorder %s13, 4
      %s20 = sphi 0, %s39
      %s21 = sphi 0, %s35
      %s22 = sphi 0, %s31
      %s23 = sphi 0, %s20
      %s24 = sphi 0, %s21
      %s25 = sphi 0, %s22
      %s26 = sphi 0, %s23
      %s27 = sphi 0, %s24
      %s28 = sphi 0, %s25
      %s46 = sphi 0, %s48
      %s49 = sphi 0, %s46
      %s50 = sphi 0, %s49
      %s66 = sphi 0, %s50
      %s74 = sphi 0, %s76
      %s77 = sphi 0, %s74
      %s78 = sphi 0, %s77
      %s94 = sphi 0, %s78
    $region4: #{tpu_custom_call.1} parent=1 // loop_header_branch
      %16 = sbr.rel (%p14) target = $region8
    $region5: #{tpu_custom_call.1} parent=1 // loop_body
      %s18 = ssub.s32 %s13, 1
      %s19 = ssub.s32 %s13, 2
      %s29 = sadd.s32 1, %s22
      %p30 = scmp.ge.s32.totalorder %s29, 1
      %s31 = scalar_select %p30, 0, %s29
      %s32 = sadd.s32 1, %s21
      %s33 = scalar_select %p30, %s32, %s21
      %p34 = scmp.ge.s32.totalorder %s33, 1
      %s35 = scalar_select %p34, 0, %s33
      %s36 = sadd.s32 1, %s20
      %s37 = scalar_select %p34, %s36, %s20
      %p38 = scmp.ge.s32.totalorder %s37, 2
      %s39 = scalar_select %p38, 0, %s37
      %s40 = sadd.s32 %s21, %s22
      %s41 = sadd.s32 %s35, %s31
      %s42 = ssub.s32 %s20, %s39
      %s43 = ssub.s32 %s40, %s41
      %s44 = sor.u32 %s42, %s43
      %p45 = scmp.eq.s32.totalorder %s44, 0
      %s47 = sadd.s32 %s46, 1
      %s48 = scalar_select %p45, %s46, %s47
      %p51 = pneg %p45
      %p52 = scmp.eq.s32.totalorder %s13, 1
      %p53 = por %p51, %p52
      %p54 = scmp.ne.s32.totalorder %s46, %s49
      %p55 = scmp.eq.s32.totalorder %s13, 0
      %p56 = por %p54, %p55
      %p57 = scmp.ne.s32.totalorder %s46, %s49
      %p58 = scmp.eq.s32.totalorder %s18, 1
      %p59 = por %p57, %p58
      %p60 = scmp.ne.s32.totalorder %s49, %s50
      %p61 = scmp.eq.s32.totalorder %s18, 0
      %p62 = por %p60, %p61
      %p63 = scmp.ne.s32.totalorder %s49, %s50
      %p64 = scmp.eq.s32.totalorder %s19, 1
      %p65 = por %p63, %p64
      %p67 = scmp.ne.s32.totalorder %s50, %s66
      %p68 = scmp.eq.s32.totalorder %s19, 0
      %p69 = por %p67, %p68
      %s70 = ssub.s32 %s20, %s39
      %s71 = ssub.s32 %s21, %s35
      %s72 = sor.u32 %s70, %s71
      %p73 = scmp.eq.s32.totalorder %s72, 0
      %s75 = sadd.s32 %s74, 1
      %s76 = scalar_select %p73, %s74, %s75
      %p79 = pneg %p73
      %p80 = scmp.eq.s32.totalorder %s13, 1
      %p81 = por %p79, %p80
      %p82 = scmp.ne.s32.totalorder %s74, %s77
      %p83 = scmp.eq.s32.totalorder %s13, 0
      %p84 = por %p82, %p83
      %p85 = scmp.ne.s32.totalorder %s74, %s77
      %p86 = scmp.eq.s32.totalorder %s18, 1
      %p87 = por %p85, %p86
      %p88 = scmp.ne.s32.totalorder %s77, %s78
      %p89 = scmp.eq.s32.totalorder %s18, 0
      %p90 = por %p88, %p89
      %p91 = scmp.ne.s32.totalorder %s77, %s78
      %p92 = scmp.eq.s32.totalorder %s19, 1
      %p93 = por %p91, %p92
      %p95 = scmp.ne.s32.totalorder %s78, %s94
      %p96 = scmp.eq.s32.totalorder %s19, 0
      %p97 = por %p95, %p96
      %p98 = scmp.le.s32.totalorder 1, %s13
      %p99 = scmp.lt.s32.totalorder %s13, 3
      %p100 = pnand %p98, %p99
      %p101 = pneg %p100
      // Predicated region
      $region9: #{tpu_custom_call.1} parent=5 // pred_check
        _
      $region10: #{tpu_custom_call.1} parent=5 // pred_check_branch
        %103 = sbr.rel (%p100) target = $region12
      $region11: #{tpu_custom_call.1} parent=5 // pred_region
        %s104 = ssub.s32 %s13, 1
      $region12: #{tpu_custom_call.1} parent=5 // pred_fallthru
        _
      %p105 = scmp.lt.s32.totalorder %s13, 2
      // Predicated region
      $region13: #{tpu_custom_call.1} parent=5 // pred_check
        %p106 = pneg %p105
      $region14: #{tpu_custom_call.1} parent=5 // pred_check_branch
        %108 = sbr.rel (%p106) target = $region16
      $region15: #{tpu_custom_call.1} parent=5 // pred_region
        // Predicated region
        $region17: #{tpu_custom_call.1} parent=15 // pred_check
          %p109 = pneg %p56
        $region18: #{tpu_custom_call.1} parent=15 // pred_check_branch
          %111 = sbr.rel (%p109) target = $region20
        $region19: #{tpu_custom_call.1} parent=15 // pred_region
          %s112 = sand.u32 %s46, 1
          %s113 = scalar_lea.sflag [#allocation3], %s112
          %s114 = sand.u32 %s46, 1
          %s115 = smul.addr %s114, 8
          %s116 = scalar_lea.vmem [#allocation2], %s115
          %s117 = sadd.s32 %s21, %s22
          %s118 = smul.u32 2, %s117
          %120 = vsyncadd %s113, 0
          %s121 = smul.addr %s20, 2
          %s122 = sadd.s32 %s118, %s121
          %s123 = smul.addr %s122, 4
          %s124 = scalar_lea.hbm %s0, %s123
          %s126 = sshll.u32 %s124, 4
          %s127 = int_to_ptr.hbm [resolvable:$true] %s126
          %s128 = sshll.u32 %s116, 4
          %s129 = int_to_ptr.vmem [resolvable:$true] %s128
          %131 = dma.hbm_to_vmem [thread:$0]  %s127, 128, %s129, %s113
        $region20: #{tpu_custom_call.1} parent=15 // pred_fallthru
          _
      $region16: #{tpu_custom_call.1} parent=5 // pred_fallthru
        _
      %p132 = scmp.le.s32.totalorder 1, %s13
      %p133 = scmp.lt.s32.totalorder %s13, 3
      %p134 = pnand %p132, %p133
      %p135 = pneg %p134
      // Predicated region
      $region21: #{tpu_custom_call.1} parent=5 // pred_check
        _
      $region22: #{tpu_custom_call.1} parent=5 // pred_check_branch
        %137 = sbr.rel (%p134) target = $region24
      $region23: #{tpu_custom_call.1} parent=5 // pred_region
        %s138 = ssub.s32 %s13, 1
        %s139 = sand.u32 %s49, 1
        %s140 = scalar_lea.sflag [#allocation3], %s139
        %s141 = sand.u32 %s49, 1
        %s142 = smul.addr %s141, 8
        %s143 = scalar_lea.vmem [#allocation2], %s142
        // Predicated region
        $region25: #{tpu_custom_call.1} parent=23 // pred_check
          %p144 = pneg %p62
        $region26: #{tpu_custom_call.1} parent=23 // pred_check_branch
          %146 = sbr.rel (%p144) target = $region28
        $region27: #{tpu_custom_call.1} parent=23 // pred_region
          %148 = dma.done %s140, 128
        $region28: #{tpu_custom_call.1} parent=23 // pred_fallthru
          _
        %s149 = sand.u32 %s49, 1
        %s150 = scalar_lea.sflag [#allocation3], %s149
        %s151 = sand.u32 %s49, 1
        %s152 = smul.addr %s151, 8
        %s153 = scalar_lea.vmem [#allocation2], %s152
        %p154 = pneg %p62
        %p155 = pneg %p59
        %p156 = pneg %p90
        %p157 = pneg %p87
        %s158 = sand.u32 %s77, 1
        %s159 = scalar_lea.sflag [#allocation4], %s158
        %s160 = sand.u32 %s77, 1
        %s161 = smul.addr %s160, 4
        %s162 = scalar_lea.vmem [#allocation5], %s161
        %s163 = sadd.s32 %s24, %s25
        %s164 = smul.u32 2, %s163
        %p165 = scmp.eq.s32.totalorder %s25, 0
        // Predicated region
        $region29: #{tpu_custom_call.1} parent=23 // pred_check
          %p166 = pneg %p165
        $region30: #{tpu_custom_call.1} parent=23 // pred_check_branch
          %168 = sbr.rel (%p166) target = $region32
        $region31: #{tpu_custom_call.1} parent=23 // pred_region
          %vm169 = vcmask 27648
          %170 = vst.msk [vmem:[%s162] sm:$0xf] %vm169, 0.0
        $region32: #{tpu_custom_call.1} parent=23 // pred_fallthru
          _
        %v171 = vld [vmem:[%s143] sm:$0xff]
        %v172 = vld [vmem:[%s162] sm:$0xf]
        %174 = vst [vmem:[#allocation1] ss:$2 sm:$0xff] %v171
        %v175 = vld.sshfl [vmem:[#allocation1] sm:$0xff pattern:$0x75316420]
        %v176 = vld.sshfl [vmem:[#allocation1 + $0x8] sm:$0xff pattern:$0x75316420]
        %179 = vst [vmem:[#allocation1] ss:$2 sm:$0xff] %v171
        %v180 = vld.sshfl [vmem:[#allocation1] sm:$0xff pattern:$0x75316420]
        %v181 = vld.sshfl [vmem:[#allocation1 + $0x8] sm:$0xff pattern:$0x75316420]
        %184 = vmatpush.xpose.msra.mxu0 0.0
        %185 = vmatpush.xpose.msra.mxu0 0.0
        %186 = vmatpush.xpose.msra.mxu0 0.0
        %187 = vmatpush.xpose.msra.mxu0 0.0
        %188 = vmatpush.xpose.msra.mxu0 0.0
        %189 = vmatpush.xpose.msra.mxu0 0.0
        %190 = vmatpush.xpose.msra.mxu0 0.0
        %191 = vmatpush.xpose.msra.mxu0 0.0
        %192 = vmatpush.xpose.msra.mxu0 0.0
        %193 = vmatpush.xpose.msra.mxu0 0.0
        %194 = vmatpush.xpose.msra.mxu0 0.0
        %195 = vmatpush.xpose.msra.mxu0 0.0
        %196 = vmatpush.xpose.msra.mxu0 0.0
        %197 = vmatpush.xpose.msra.mxu0 0.0
        %198 = vmatpush.xpose.msra.mxu0 0.0
        %199 = vmatpush.xpose.msra.mxu0 %v180
        %200 = vmatmul.f32.gmra.mxu0 %v175
        %v201 = vpop.f32.mrf.mxu0
        %v202 = vadd.f32 0.0, %v201
        %203 = vdwg.mxu0
        %204 = vmatpush.xpose.msra.mxu0 0.0
        %205 = vmatpush.xpose.msra.mxu0 0.0
        %206 = vmatpush.xpose.msra.mxu0 0.0
        %207 = vmatpush.xpose.msra.mxu0 0.0
        %208 = vmatpush.xpose.msra.mxu0 0.0
        %209 = vmatpush.xpose.msra.mxu0 0.0
        %210 = vmatpush.xpose.msra.mxu0 0.0
        %211 = vmatpush.xpose.msra.mxu0 0.0
        %212 = vmatpush.xpose.msra.mxu0 0.0
        %213 = vmatpush.xpose.msra.mxu0 0.0
        %214 = vmatpush.xpose.msra.mxu0 0.0
        %215 = vmatpush.xpose.msra.mxu0 0.0
        %216 = vmatpush.xpose.msra.mxu0 0.0
        %217 = vmatpush.xpose.msra.mxu0 0.0
        %218 = vmatpush.xpose.msra.mxu0 0.0
        %219 = vmatpush.xpose.msra.mxu0 %v181
        %220 = vmatmul.f32.gmra.mxu0 %v176
        %v221 = vpop.f32.mrf.mxu0
        %v222 = vadd.f32 %v202, %v221
        %223 = vdwg.mxu0
        %v224 = vadd.f32 %v172, %v222
        %vm225 = vcmask 27648
        %226 = vst.msk [vmem:[%s162] sm:$0xf] %vm225, %v224
        %s227 = sand.u32 %s77, 1
        %s228 = scalar_lea.sflag [#allocation4], %s227
        %s229 = sand.u32 %s77, 1
        %s230 = smul.addr %s229, 4
        %s231 = scalar_lea.vmem [#allocation5], %s230
        // Predicated region
        $region33: #{tpu_custom_call.1} parent=23 // pred_check
          %p232 = pneg %p87
        $region34: #{tpu_custom_call.1} parent=23 // pred_check_branch
          %234 = sbr.rel (%p232) target = $region36
        $region35: #{tpu_custom_call.1} parent=23 // pred_region
          %236 = vsyncadd %s228, 0
          %s237 = sadd.s32 %s24, %s23
          %s238 = smul.addr %s237, 4
          %s239 = scalar_lea.hbm %s1, %s238
          %s241 = sshll.u32 %s231, 4
          %s242 = int_to_ptr.vmem [resolvable:$true] %s241
          %s243 = sshll.u32 %s239, 4
          %s244 = int_to_ptr.hbm [resolvable:$true] %s243
          %246 = dma.vmem_to_hbm [thread:$0]  %s242, 64, %s244, %s228
        $region36: #{tpu_custom_call.1} parent=23 // pred_fallthru
          _
      $region24: #{tpu_custom_call.1} parent=5 // pred_fallthru
        _
      %p247 = scmp.le.s32.totalorder 2, %s13
      // Predicated region
      $region37: #{tpu_custom_call.1} parent=5 // pred_check
        %p248 = pneg %p247
      $region38: #{tpu_custom_call.1} parent=5 // pred_check_branch
        %250 = sbr.rel (%p248) target = $region40
      $region39: #{tpu_custom_call.1} parent=5 // pred_region
        %s251 = ssub.s32 %s13, 2
        // Predicated region
        $region41: #{tpu_custom_call.1} parent=39 // pred_check
          %p252 = pneg %p93
        $region42: #{tpu_custom_call.1} parent=39 // pred_check_branch
          %254 = sbr.rel (%p252) target = $region44
        $region43: #{tpu_custom_call.1} parent=39 // pred_region
          %s255 = sand.u32 %s78, 1
          %s256 = scalar_lea.sflag [#allocation4], %s255
          %s257 = sand.u32 %s78, 1
          %s258 = smul.addr %s257, 4
          %s259 = scalar_lea.vmem [#allocation5], %s258
          %261 = dma.done %s256, 64
        $region44: #{tpu_custom_call.1} parent=39 // pred_fallthru
          _
      $region40: #{tpu_custom_call.1} parent=5 // pred_fallthru
        _
    $region6: #{tpu_custom_call.1} parent=1 // loop_footer
      %s17 = sadd.s32 1, %s13
    $region7: #{tpu_custom_call.1} parent=1 // loop_footer_branch
      %12 = sbr.rel target = $region3
    $region8: #{tpu_custom_call.1} parent=1 // loop_exit
      _
    %262 = vsyncpa [#allocation3], 1
    %s263 = scalar_lea.sflag [#allocation3], 1
    %264 = vsyncpa %s263, 1
    %265 = vsyncpa [#allocation4], 1
    %s266 = scalar_lea.sflag [#allocation4], 1
    %267 = vsyncpa %s266, 1

</llo_original>
